<compile_context>
chip_gen: v6e
topology: v6e:2x2x1
jax: 0.10.0
libtpu: 0.0.40
codegen_flags: <defaults>
</compile_context>

<pallas_src>
import math

import jax
import jax.numpy as jnp
from jax.experimental import pallas as pl
from jax.experimental.pallas import tpu as pltpu

_INV_SQRT2 = 1.0 / math.sqrt(2.0)


def _erf(x):
    # Abramowitz & Stegun 7.1.26 rational approximation, |error| < 1.5e-7.
    p = 0.3275911
    a1, a2, a3, a4, a5 = (0.254829592, -0.284496736, 1.421413741,
                          -1.453152027, 1.061405429)
    ax = jnp.abs(x)
    t = 1.0 / (1.0 + p * ax)          # exact divide: keep full f32 accuracy
    poly = ((((a5 * t + a4) * t + a3) * t + a2) * t + a1) * t
    y = 1.0 - poly * jnp.exp(-ax * ax)
    return jnp.where(x < 0.0, -y, y)


def _gelu(x):
    # Exact (erf-based) GELU, matching torch.nn.GELU() default.
    return 0.5 * x * (1.0 + _erf(x * _INV_SQRT2))


def _make_kernel(B, C, M, HW, chunk=8):
    def kernel(x_ref, w1_ref, b1_ref, w2_ref, b2_ref, o_ref, h_ref):
        # x_ref : (B*C, HW)   NCHW flattened; spatial on the 128-wide lane axis
        # w1_ref: (M, C), b1_ref: (M, 1)   fc1 (1x1 conv, hidden -> mlp_dim)
        # w2_ref: (C, M), b2_ref: (C, 1)   fc2 (1x1 conv, mlp_dim -> hidden)
        # o_ref : (B*C, HW)
        # h_ref : (M, B*HW)   VMEM scratch for the hidden activations

        # Fold the batch into columns: (C, B*HW). Lane-axis concat of tile-aligned
        # (C, HW) slabs -> each layer below is a single matmul (one weight push /
        # one result drain per layer, amortized over all B*HW columns).
        x_cols = jnp.concatenate(
            [x_ref[b * C:(b + 1) * C, :] for b in range(B)], axis=1)

        # fc1 for the whole batch in one dot (f32 MXU inputs keep K=4 accuracy).
        h_ref[...] = jnp.dot(w1_ref[...], x_cols,
                             preferred_element_type=jnp.float32)

        # Bias + exact GELU, chunked over sublane blocks so the erf temporaries
        # stay well under the 64-vreg file (no spills).
        for r in range(0, M, chunk):
            e = min(r + chunk, M)
            h_ref[r:e, :] = _gelu(h_ref[r:e, :] + b1_ref[r:e, :])

        # fc2 for the whole batch in one dot; bias broadcast exactly once.
        y = jnp.dot(w2_ref[...], h_ref[...],
                    preferred_element_type=jnp.float32) + b2_ref[...]   # (C, B*HW)

        # Re-stack per-batch slabs to (B*C, HW) and do ONE full, unmasked,
        # (8,128)-aligned store.
        y_out = jnp.concatenate(
            [y[:, b * HW:(b + 1) * HW] for b in range(B)], axis=0)
        o_ref[...] = y_out.astype(o_ref.dtype)

    return kernel


def mlp_channel_forward(x_nchw, params):
    """x_nchw: (B, C, H, W) float32 (PyTorch-native layout, consumed directly)."""
    w1, b1, w2, b2 = params            # (M, C), (M,), (C, M), (C,)
    B, C, H, W = x_nchw.shape
    M = w1.shape[0]
    HW = H * W

    x2d = x_nchw.reshape(B * C, HW)    # contiguous reshape: zero-copy, (8,128)-aligned
    b1c = b1.reshape(M, 1)
    b2c = b2.reshape(C, 1)

    def full(shape):
        return pl.BlockSpec(shape, lambda i, _n=len(shape): (0,) * _n)

    kernel = _make_kernel(B, C, M, HW)

    out = pl.pallas_call(
        kernel,
        out_shape=jax.ShapeDtypeStruct((B * C, HW), jnp.float32),
        grid_spec=pltpu.PrefetchScalarGridSpec(
            num_scalar_prefetch=0,
            grid=(1,),                        # whole problem in one step (tiny working set)
            in_specs=[
                full((B * C, HW)),            # x (NCHW, spatial on lanes)
                full((M, C)), full((M, 1)),   # fc1 weight / bias
                full((C, M)), full((C, 1)),   # fc2 weight / bias
            ],
            out_specs=full((B * C, HW)),
            scratch_shapes=[pltpu.VMEM((M, B * HW), jnp.float32)],
        ),
        compiler_params=pltpu.CompilerParams(
            dimension_semantics=("arbitrary",)),
    )(x2d, w1, b1c, w2, b2c)
    return out.reshape(B, C, H, W)


def mlp_channel_reference(x_nchw, params):
    # Pure-JAX reference matching the PyTorch module (exact GELU).
    w1, b1, w2, b2 = params
    h = jnp.einsum("oi,bihw->bohw", w1, x_nchw) + b1.reshape(1, -1, 1, 1)
    h = jax.nn.gelu(h, approximate=False)
    y = jnp.einsum("oi,bihw->bohw", w2, h) + b2.reshape(1, -1, 1, 1)
    return y


if __name__ == "__main__":
    B, C, H, W = 2, 4, 16, 16   # hidden_size = 4
    M = 32                      # mlp_dim = 32

    key = jax.random.PRNGKey(0)
    kx, k1, k2, k3, k4 = jax.random.split(key, 5)

    # Kaiming-uniform-like bounds for 1x1 convs (fan_in = in_channels).
    lim1 = 1.0 / math.sqrt(C)
    lim2 = 1.0 / math.sqrt(M)
    w1 = jax.random.uniform(k1, (M, C), jnp.float32, -lim1, lim1)
    b1 = jax.random.uniform(k2, (M,), jnp.float32, -lim1, lim1)
    w2 = jax.random.uniform(k3, (C, M), jnp.float32, -lim2, lim2)
    b2 = jax.random.uniform(k4, (C,), jnp.float32, -lim2, lim2)
    params = (w1, b1, w2, b2)

    x = jax.random.normal(kx, (B, C, H, W), jnp.float32)

    out = jax.block_until_ready(mlp_channel_forward(x, params))
    ref = mlp_channel_reference(x, params)

    max_err = float(jnp.max(jnp.abs(out - ref)))
    assert jnp.allclose(out, ref, atol=2e-4, rtol=1e-3), max_err

    print("KERNEL_OK")
</pallas_src>

<mosaic_0001>
module attributes {stable_mosaic.version = 11 : i64} {
  func.func @kernel(%arg0: i32, %arg1: memref<8x256xf32, #tpu.memory_space<vmem>>, %arg2: memref<32x4xf32, #tpu.memory_space<vmem>>, %arg3: memref<32x1xf32, #tpu.memory_space<vmem>>, %arg4: memref<4x32xf32, #tpu.memory_space<vmem>>, %arg5: memref<4x1xf32, #tpu.memory_space<vmem>>, %arg6: memref<8x256xf32, #tpu.memory_space<vmem>>, %arg7: memref<32x512xf32, #tpu.memory_space<vmem>>) attributes {dimension_semantics = [#tpu.dimension_semantics<arbitrary>], iteration_bounds = array<i64: 1>, scalar_prefetch = 0 : i64, scratch_operands = 1 : i64, tpu.core_type = #tpu.core_type<tc>, window_params = [{pipeline_mode = #tpu.pipeline_mode<synchronous>, transform_indices = @transform_0, window_bounds = array<i64: 8, 256>}, {pipeline_mode = #tpu.pipeline_mode<synchronous>, transform_indices = @transform_1, window_bounds = array<i64: 32, 4>}, {pipeline_mode = #tpu.pipeline_mode<synchronous>, transform_indices = @transform_2, window_bounds = array<i64: 32, 1>}, {pipeline_mode = #tpu.pipeline_mode<synchronous>, transform_indices = @transform_3, window_bounds = array<i64: 4, 32>}, {pipeline_mode = #tpu.pipeline_mode<synchronous>, transform_indices = @transform_4, window_bounds = array<i64: 4, 1>}, {pipeline_mode = #tpu.pipeline_mode<synchronous>, transform_indices = @transform_5, window_bounds = array<i64: 8, 256>}]} {
    %c0 = arith.constant 0 : index
    %c0_0 = arith.constant 0 : index
    %0 = vector.load %arg1[%c0, %c0_0] : memref<8x256xf32, #tpu.memory_space<vmem>>, vector<4x256xf32>
    %c4 = arith.constant 4 : index
    %c0_1 = arith.constant 0 : index
    %1 = vector.load %arg1[%c4, %c0_1] : memref<8x256xf32, #tpu.memory_space<vmem>>, vector<4x256xf32>
    %2 = tpu.concatenate %0, %1 in 1 : vector<4x256xf32>, vector<4x256xf32> -> vector<4x512xf32>
    %c0_2 = arith.constant 0 : index
    %c0_3 = arith.constant 0 : index
    %3 = vector.load %arg2[%c0_2, %c0_3] : memref<32x4xf32, #tpu.memory_space<vmem>>, vector<32x4xf32>
    %cst = arith.constant dense<0.000000e+00> : vector<32x512xf32>
    %4 = tpu.matmul %3, %2, %cst {dimension_numbers = #tpu.dot_dimension_numbers<[1], [0], [0], [1], [0, 0, 1, 1], [], []>} : vector<32x4xf32>, vector<4x512xf32>, vector<32x512xf32> -> vector<32x512xf32>
    %c0_4 = arith.constant 0 : index
    %c0_5 = arith.constant 0 : index
    %5 = vector.load %arg7[%c0_4, %c0_5] : memref<32x512xf32, #tpu.memory_space<vmem>>, vector<32x512xf32>
    tpu.vector_store %arg7[%c0_4, %c0_5], %4 {strides = array<i32>} : memref<32x512xf32, #tpu.memory_space<vmem>>, vector<32x512xf32>,
    %c0_6 = arith.constant 0 : index
    %c0_7 = arith.constant 0 : index
    %6 = vector.load %arg7[%c0_6, %c0_7] : memref<32x512xf32, #tpu.memory_space<vmem>>, vector<8x512xf32>
    %c0_8 = arith.constant 0 : index
    %c0_9 = arith.constant 0 : index
    %7 = vector.load %arg3[%c0_8, %c0_9] : memref<32x1xf32, #tpu.memory_space<vmem>>, vector<8x1xf32>
    %8 = vector.broadcast %7 : vector<8x1xf32> to vector<8x512xf32>
    %9 = arith.addf %6, %8 : vector<8x512xf32>
    %cst_10 = arith.constant 5.000000e-01 : f32
    %10 = vector.broadcast %cst_10 : f32 to vector<8x512xf32>
    %11 = arith.mulf %10, %9 : vector<8x512xf32>
    %cst_11 = arith.constant 0.707106769 : f32
    %12 = vector.broadcast %cst_11 : f32 to vector<8x512xf32>
    %13 = arith.mulf %9, %12 : vector<8x512xf32>
    %14 = math.absf %13 : vector<8x512xf32>
    %cst_12 = arith.constant 0.327591091 : f32
    %15 = vector.broadcast %cst_12 : f32 to vector<8x512xf32>
    %16 = arith.mulf %15, %14 : vector<8x512xf32>
    %cst_13 = arith.constant 1.000000e+00 : f32
    %17 = vector.broadcast %cst_13 : f32 to vector<8x512xf32>
    %18 = arith.addf %17, %16 : vector<8x512xf32>
    %cst_14 = arith.constant 1.000000e+00 : f32
    %19 = vector.broadcast %cst_14 : f32 to vector<8x512xf32>
    %20 = arith.divf %19, %18 : vector<8x512xf32>
    %cst_15 = arith.constant 1.06140542 : f32
    %21 = vector.broadcast %cst_15 : f32 to vector<8x512xf32>
    %22 = arith.mulf %21, %20 : vector<8x512xf32>
    %cst_16 = arith.constant -1.45315206 : f32
    %23 = vector.broadcast %cst_16 : f32 to vector<8x512xf32>
    %24 = arith.addf %22, %23 : vector<8x512xf32>
    %25 = arith.mulf %24, %20 : vector<8x512xf32>
    %cst_17 = arith.constant 1.42141378 : f32
    %26 = vector.broadcast %cst_17 : f32 to vector<8x512xf32>
    %27 = arith.addf %25, %26 : vector<8x512xf32>
    %28 = arith.mulf %27, %20 : vector<8x512xf32>
    %cst_18 = arith.constant -0.284496725 : f32
    %29 = vector.broadcast %cst_18 : f32 to vector<8x512xf32>
    %30 = arith.addf %28, %29 : vector<8x512xf32>
    %31 = arith.mulf %30, %20 : vector<8x512xf32>
    %cst_19 = arith.constant 0.254829586 : f32
    %32 = vector.broadcast %cst_19 : f32 to vector<8x512xf32>
    %33 = arith.addf %31, %32 : vector<8x512xf32>
    %34 = arith.mulf %33, %20 : vector<8x512xf32>
    %cst_20 = arith.constant 0.000000e+00 : f32
    %35 = vector.broadcast %cst_20 : f32 to vector<8x512xf32>
    %36 = arith.subf %35, %14 : vector<8x512xf32>
    %37 = arith.mulf %36, %14 : vector<8x512xf32>
    %38 = math.exp %37 : vector<8x512xf32>
    %39 = arith.mulf %34, %38 : vector<8x512xf32>
    %cst_21 = arith.constant 1.000000e+00 : f32
    %40 = vector.broadcast %cst_21 : f32 to vector<8x512xf32>
    %41 = arith.subf %40, %39 : vector<8x512xf32>
    %cst_22 = arith.constant 0.000000e+00 : f32
    %42 = vector.broadcast %cst_22 : f32 to vector<8x512xf32>
    %43 = arith.cmpf olt, %13, %42 : vector<8x512xf32>
    %cst_23 = arith.constant 0.000000e+00 : f32
    %44 = vector.broadcast %cst_23 : f32 to vector<8x512xf32>
    %45 = arith.subf %44, %41 : vector<8x512xf32>
    %46 = arith.select %43, %45, %41 : vector<8x512xi1>, vector<8x512xf32>
    %cst_24 = arith.constant 1.000000e+00 : f32
    %47 = vector.broadcast %cst_24 : f32 to vector<8x512xf32>
    %48 = arith.addf %47, %46 : vector<8x512xf32>
    %49 = arith.mulf %11, %48 : vector<8x512xf32>
    %c0_25 = arith.constant 0 : index
    %c0_26 = arith.constant 0 : index
    %50 = vector.load %arg7[%c0_25, %c0_26] : memref<32x512xf32, #tpu.memory_space<vmem>>, vector<8x512xf32>
    tpu.vector_store %arg7[%c0_25, %c0_26], %49 {strides = array<i32>} : memref<32x512xf32, #tpu.memory_space<vmem>>, vector<8x512xf32>,
    %c8 = arith.constant 8 : index
    %c0_27 = arith.constant 0 : index
    %51 = vector.load %arg7[%c8, %c0_27] : memref<32x512xf32, #tpu.memory_space<vmem>>, vector<8x512xf32>
    %c8_28 = arith.constant 8 : index
    %c0_29 = arith.constant 0 : index
    %52 = vector.load %arg3[%c8_28, %c0_29] : memref<32x1xf32, #tpu.memory_space<vmem>>, vector<8x1xf32>
    %53 = vector.broadcast %52 : vector<8x1xf32> to vector<8x512xf32>
    %54 = arith.addf %51, %53 : vector<8x512xf32>
    %cst_30 = arith.constant 5.000000e-01 : f32
    %55 = vector.broadcast %cst_30 : f32 to vector<8x512xf32>
    %56 = arith.mulf %55, %54 : vector<8x512xf32>
    %cst_31 = arith.constant 0.707106769 : f32
    %57 = vector.broadcast %cst_31 : f32 to vector<8x512xf32>
    %58 = arith.mulf %54, %57 : vector<8x512xf32>
    %59 = math.absf %58 : vector<8x512xf32>
    %cst_32 = arith.constant 0.327591091 : f32
    %60 = vector.broadcast %cst_32 : f32 to vector<8x512xf32>
    %61 = arith.mulf %60, %59 : vector<8x512xf32>
    %cst_33 = arith.constant 1.000000e+00 : f32
    %62 = vector.broadcast %cst_33 : f32 to vector<8x512xf32>
    %63 = arith.addf %62, %61 : vector<8x512xf32>
    %cst_34 = arith.constant 1.000000e+00 : f32
    %64 = vector.broadcast %cst_34 : f32 to vector<8x512xf32>
    %65 = arith.divf %64, %63 : vector<8x512xf32>
    %cst_35 = arith.constant 1.06140542 : f32
    %66 = vector.broadcast %cst_35 : f32 to vector<8x512xf32>
    %67 = arith.mulf %66, %65 : vector<8x512xf32>
    %cst_36 = arith.constant -1.45315206 : f32
    %68 = vector.broadcast %cst_36 : f32 to vector<8x512xf32>
    %69 = arith.addf %67, %68 : vector<8x512xf32>
    %70 = arith.mulf %69, %65 : vector<8x512xf32>
    %cst_37 = arith.constant 1.42141378 : f32
    %71 = vector.broadcast %cst_37 : f32 to vector<8x512xf32>
    %72 = arith.addf %70, %71 : vector<8x512xf32>
    %73 = arith.mulf %72, %65 : vector<8x512xf32>
    %cst_38 = arith.constant -0.284496725 : f32
    %74 = vector.broadcast %cst_38 : f32 to vector<8x512xf32>
    %75 = arith.addf %73, %74 : vector<8x512xf32>
    %76 = arith.mulf %75, %65 : vector<8x512xf32>
    %cst_39 = arith.constant 0.254829586 : f32
    %77 = vector.broadcast %cst_39 : f32 to vector<8x512xf32>
    %78 = arith.addf %76, %77 : vector<8x512xf32>
    %79 = arith.mulf %78, %65 : vector<8x512xf32>
    %cst_40 = arith.constant 0.000000e+00 : f32
    %80 = vector.broadcast %cst_40 : f32 to vector<8x512xf32>
    %81 = arith.subf %80, %59 : vector<8x512xf32>
    %82 = arith.mulf %81, %59 : vector<8x512xf32>
    %83 = math.exp %82 : vector<8x512xf32>
    %84 = arith.mulf %79, %83 : vector<8x512xf32>
    %cst_41 = arith.constant 1.000000e+00 : f32
    %85 = vector.broadcast %cst_41 : f32 to vector<8x512xf32>
    %86 = arith.subf %85, %84 : vector<8x512xf32>
    %cst_42 = arith.constant 0.000000e+00 : f32
    %87 = vector.broadcast %cst_42 : f32 to vector<8x512xf32>
    %88 = arith.cmpf olt, %58, %87 : vector<8x512xf32>
    %cst_43 = arith.constant 0.000000e+00 : f32
    %89 = vector.broadcast %cst_43 : f32 to vector<8x512xf32>
    %90 = arith.subf %89, %86 : vector<8x512xf32>
    %91 = arith.select %88, %90, %86 : vector<8x512xi1>, vector<8x512xf32>
    %cst_44 = arith.constant 1.000000e+00 : f32
    %92 = vector.broadcast %cst_44 : f32 to vector<8x512xf32>
    %93 = arith.addf %92, %91 : vector<8x512xf32>
    %94 = arith.mulf %56, %93 : vector<8x512xf32>
    %c8_45 = arith.constant 8 : index
    %c0_46 = arith.constant 0 : index
    %95 = vector.load %arg7[%c8_45, %c0_46] : memref<32x512xf32, #tpu.memory_space<vmem>>, vector<8x512xf32>
    tpu.vector_store %arg7[%c8_45, %c0_46], %94 {strides = array<i32>} : memref<32x512xf32, #tpu.memory_space<vmem>>, vector<8x512xf32>,
    %c16 = arith.constant 16 : index
    %c0_47 = arith.constant 0 : index
    %96 = vector.load %arg7[%c16, %c0_47] : memref<32x512xf32, #tpu.memory_space<vmem>>, vector<8x512xf32>
    %c16_48 = arith.constant 16 : index
    %c0_49 = arith.constant 0 : index
    %97 = vector.load %arg3[%c16_48, %c0_49] : memref<32x1xf32, #tpu.memory_space<vmem>>, vector<8x1xf32>
    %98 = vector.broadcast %97 : vector<8x1xf32> to vector<8x512xf32>
    %99 = arith.addf %96, %98 : vector<8x512xf32>
    %cst_50 = arith.constant 5.000000e-01 : f32
    %100 = vector.broadcast %cst_50 : f32 to vector<8x512xf32>
    %101 = arith.mulf %100, %99 : vector<8x512xf32>
    %cst_51 = arith.constant 0.707106769 : f32
    %102 = vector.broadcast %cst_51 : f32 to vector<8x512xf32>
    %103 = arith.mulf %99, %102 : vector<8x512xf32>
    %104 = math.absf %103 : vector<8x512xf32>
    %cst_52 = arith.constant 0.327591091 : f32
    %105 = vector.broadcast %cst_52 : f32 to vector<8x512xf32>
    %106 = arith.mulf %105, %104 : vector<8x512xf32>
    %cst_53 = arith.constant 1.000000e+00 : f32
    %107 = vector.broadcast %cst_53 : f32 to vector<8x512xf32>
    %108 = arith.addf %107, %106 : vector<8x512xf32>
    %cst_54 = arith.constant 1.000000e+00 : f32
    %109 = vector.broadcast %cst_54 : f32 to vector<8x512xf32>
    %110 = arith.divf %109, %108 : vector<8x512xf32>
    %cst_55 = arith.constant 1.06140542 : f32
    %111 = vector.broadcast %cst_55 : f32 to vector<8x512xf32>
    %112 = arith.mulf %111, %110 : vector<8x512xf32>
    %cst_56 = arith.constant -1.45315206 : f32
    %113 = vector.broadcast %cst_56 : f32 to vector<8x512xf32>
    %114 = arith.addf %112, %113 : vector<8x512xf32>
    %115 = arith.mulf %114, %110 : vector<8x512xf32>
    %cst_57 = arith.constant 1.42141378 : f32
    %116 = vector.broadcast %cst_57 : f32 to vector<8x512xf32>
    %117 = arith.addf %115, %116 : vector<8x512xf32>
    %118 = arith.mulf %117, %110 : vector<8x512xf32>
    %cst_58 = arith.constant -0.284496725 : f32
    %119 = vector.broadcast %cst_58 : f32 to vector<8x512xf32>
    %120 = arith.addf %118, %119 : vector<8x512xf32>
    %121 = arith.mulf %120, %110 : vector<8x512xf32>
    %cst_59 = arith.constant 0.254829586 : f32
    %122 = vector.broadcast %cst_59 : f32 to vector<8x512xf32>
    %123 = arith.addf %121, %122 : vector<8x512xf32>
    %124 = arith.mulf %123, %110 : vector<8x512xf32>
    %cst_60 = arith.constant 0.000000e+00 : f32
    %125 = vector.broadcast %cst_60 : f32 to vector<8x512xf32>
    %126 = arith.subf %125, %104 : vector<8x512xf32>
    %127 = arith.mulf %126, %104 : vector<8x512xf32>
    %128 = math.exp %127 : vector<8x512xf32>
    %129 = arith.mulf %124, %128 : vector<8x512xf32>
    %cst_61 = arith.constant 1.000000e+00 : f32
    %130 = vector.broadcast %cst_61 : f32 to vector<8x512xf32>
    %131 = arith.subf %130, %129 : vector<8x512xf32>
    %cst_62 = arith.constant 0.000000e+00 : f32
    %132 = vector.broadcast %cst_62 : f32 to vector<8x512xf32>
    %133 = arith.cmpf olt, %103, %132 : vector<8x512xf32>
    %cst_63 = arith.constant 0.000000e+00 : f32
    %134 = vector.broadcast %cst_63 : f32 to vector<8x512xf32>
    %135 = arith.subf %134, %131 : vector<8x512xf32>
    %136 = arith.select %133, %135, %131 : vector<8x512xi1>, vector<8x512xf32>
    %cst_64 = arith.constant 1.000000e+00 : f32
    %137 = vector.broadcast %cst_64 : f32 to vector<8x512xf32>
    %138 = arith.addf %137, %136 : vector<8x512xf32>
    %139 = arith.mulf %101, %138 : vector<8x512xf32>
    %c16_65 = arith.constant 16 : index
    %c0_66 = arith.constant 0 : index
    %140 = vector.load %arg7[%c16_65, %c0_66] : memref<32x512xf32, #tpu.memory_space<vmem>>, vector<8x512xf32>
    tpu.vector_store %arg7[%c16_65, %c0_66], %139 {strides = array<i32>} : memref<32x512xf32, #tpu.memory_space<vmem>>, vector<8x512xf32>,
    %c24 = arith.constant 24 : index
    %c0_67 = arith.constant 0 : index
    %141 = vector.load %arg7[%c24, %c0_67] : memref<32x512xf32, #tpu.memory_space<vmem>>, vector<8x512xf32>
    %c24_68 = arith.constant 24 : index
    %c0_69 = arith.constant 0 : index
    %142 = vector.load %arg3[%c24_68, %c0_69] : memref<32x1xf32, #tpu.memory_space<vmem>>, vector<8x1xf32>
    %143 = vector.broadcast %142 : vector<8x1xf32> to vector<8x512xf32>
    %144 = arith.addf %141, %143 : vector<8x512xf32>
    %cst_70 = arith.constant 5.000000e-01 : f32
    %145 = vector.broadcast %cst_70 : f32 to vector<8x512xf32>
    %146 = arith.mulf %145, %144 : vector<8x512xf32>
    %cst_71 = arith.constant 0.707106769 : f32
    %147 = vector.broadcast %cst_71 : f32 to vector<8x512xf32>
    %148 = arith.mulf %144, %147 : vector<8x512xf32>
    %149 = math.absf %148 : vector<8x512xf32>
    %cst_72 = arith.constant 0.327591091 : f32
    %150 = vector.broadcast %cst_72 : f32 to vector<8x512xf32>
    %151 = arith.mulf %150, %149 : vector<8x512xf32>
    %cst_73 = arith.constant 1.000000e+00 : f32
    %152 = vector.broadcast %cst_73 : f32 to vector<8x512xf32>
    %153 = arith.addf %152, %151 : vector<8x512xf32>
    %cst_74 = arith.constant 1.000000e+00 : f32
    %154 = vector.broadcast %cst_74 : f32 to vector<8x512xf32>
    %155 = arith.divf %154, %153 : vector<8x512xf32>
    %cst_75 = arith.constant 1.06140542 : f32
    %156 = vector.broadcast %cst_75 : f32 to vector<8x512xf32>
    %157 = arith.mulf %156, %155 : vector<8x512xf32>
    %cst_76 = arith.constant -1.45315206 : f32
    %158 = vector.broadcast %cst_76 : f32 to vector<8x512xf32>
    %159 = arith.addf %157, %158 : vector<8x512xf32>
    %160 = arith.mulf %159, %155 : vector<8x512xf32>
    %cst_77 = arith.constant 1.42141378 : f32
    %161 = vector.broadcast %cst_77 : f32 to vector<8x512xf32>
    %162 = arith.addf %160, %161 : vector<8x512xf32>
    %163 = arith.mulf %162, %155 : vector<8x512xf32>
    %cst_78 = arith.constant -0.284496725 : f32
    %164 = vector.broadcast %cst_78 : f32 to vector<8x512xf32>
    %165 = arith.addf %163, %164 : vector<8x512xf32>
    %166 = arith.mulf %165, %155 : vector<8x512xf32>
    %cst_79 = arith.constant 0.254829586 : f32
    %167 = vector.broadcast %cst_79 : f32 to vector<8x512xf32>
    %168 = arith.addf %166, %167 : vector<8x512xf32>
    %169 = arith.mulf %168, %155 : vector<8x512xf32>
    %cst_80 = arith.constant 0.000000e+00 : f32
    %170 = vector.broadcast %cst_80 : f32 to vector<8x512xf32>
    %171 = arith.subf %170, %149 : vector<8x512xf32>
    %172 = arith.mulf %171, %149 : vector<8x512xf32>
    %173 = math.exp %172 : vector<8x512xf32>
    %174 = arith.mulf %169, %173 : vector<8x512xf32>
    %cst_81 = arith.constant 1.000000e+00 : f32
    %175 = vector.broadcast %cst_81 : f32 to vector<8x512xf32>
    %176 = arith.subf %175, %174 : vector<8x512xf32>
    %cst_82 = arith.constant 0.000000e+00 : f32
    %177 = vector.broadcast %cst_82 : f32 to vector<8x512xf32>
    %178 = arith.cmpf olt, %148, %177 : vector<8x512xf32>
    %cst_83 = arith.constant 0.000000e+00 : f32
    %179 = vector.broadcast %cst_83 : f32 to vector<8x512xf32>
    %180 = arith.subf %179, %176 : vector<8x512xf32>
    %181 = arith.select %178, %180, %176 : vector<8x512xi1>, vector<8x512xf32>
    %cst_84 = arith.constant 1.000000e+00 : f32
    %182 = vector.broadcast %cst_84 : f32 to vector<8x512xf32>
    %183 = arith.addf %182, %181 : vector<8x512xf32>
    %184 = arith.mulf %146, %183 : vector<8x512xf32>
    %c24_85 = arith.constant 24 : index
    %c0_86 = arith.constant 0 : index
    %185 = vector.load %arg7[%c24_85, %c0_86] : memref<32x512xf32, #tpu.memory_space<vmem>>, vector<8x512xf32>
    tpu.vector_store %arg7[%c24_85, %c0_86], %184 {strides = array<i32>} : memref<32x512xf32, #tpu.memory_space<vmem>>, vector<8x512xf32>,
    %c0_87 = arith.constant 0 : index
    %c0_88 = arith.constant 0 : index
    %186 = vector.load %arg4[%c0_87, %c0_88] : memref<4x32xf32, #tpu.memory_space<vmem>>, vector<4x32xf32>
    %c0_89 = arith.constant 0 : index
    %c0_90 = arith.constant 0 : index
    %187 = vector.load %arg7[%c0_89, %c0_90] : memref<32x512xf32, #tpu.memory_space<vmem>>, vector<32x512xf32>
    %cst_91 = arith.constant dense<0.000000e+00> : vector<4x512xf32>
    %188 = tpu.matmul %186, %187, %cst_91 {dimension_numbers = #tpu.dot_dimension_numbers<[1], [0], [0], [1], [0, 0, 1, 1], [], []>} : vector<4x32xf32>, vector<32x512xf32>, vector<4x512xf32> -> vector<4x512xf32>
    %c0_92 = arith.constant 0 : index
    %c0_93 = arith.constant 0 : index
    %189 = vector.load %arg5[%c0_92, %c0_93] : memref<4x1xf32, #tpu.memory_space<vmem>>, vector<4x1xf32>
    %190 = vector.broadcast %189 : vector<4x1xf32> to vector<4x512xf32>
    %191 = arith.addf %188, %190 : vector<4x512xf32>
    %192 = vector.extract_strided_slice %191 {offsets = [0, 0], sizes = [4, 256], strides = [1, 1]} : vector<4x512xf32> to vector<4x256xf32>
    %193 = vector.extract_strided_slice %191 {offsets = [0, 256], sizes = [4, 256], strides = [1, 1]} : vector<4x512xf32> to vector<4x256xf32>
    %194 = tpu.concatenate %192, %193 in 0 : vector<4x256xf32>, vector<4x256xf32> -> vector<8x256xf32>
    %c0_94 = arith.constant 0 : index
    %c0_95 = arith.constant 0 : index
    %195 = vector.load %arg6[%c0_94, %c0_95] : memref<8x256xf32, #tpu.memory_space<vmem>>, vector<8x256xf32>
    tpu.vector_store %arg6[%c0_94, %c0_95], %194 {strides = array<i32>} : memref<8x256xf32, #tpu.memory_space<vmem>>, vector<8x256xf32>,
    return
  }
  func.func @transform_0(%arg0: i32) -> (i32, i32) {
    %c0_i32 = arith.constant 0 : i32
    %c0_i32_0 = arith.constant 0 : i32
    %c0_i32_1 = arith.constant 0 : i32
    return %c0_i32, %c0_i32_0 : i32, i32
  }
  func.func @transform_1(%arg0: i32) -> (i32, i32) {
    %c0_i32 = arith.constant 0 : i32
    %c0_i32_0 = arith.constant 0 : i32
    %c0_i32_1 = arith.constant 0 : i32
    return %c0_i32, %c0_i32_0 : i32, i32
  }
  func.func @transform_2(%arg0: i32) -> (i32, i32) {
    %c0_i32 = arith.constant 0 : i32
    %c0_i32_0 = arith.constant 0 : i32
    %c0_i32_1 = arith.constant 0 : i32
    return %c0_i32, %c0_i32_0 : i32, i32
  }
  func.func @transform_3(%arg0: i32) -> (i32, i32) {
    %c0_i32 = arith.constant 0 : i32
    %c0_i32_0 = arith.constant 0 : i32
    %c0_i32_1 = arith.constant 0 : i32
    return %c0_i32, %c0_i32_0 : i32, i32
  }
  func.func @transform_4(%arg0: i32) -> (i32, i32) {
    %c0_i32 = arith.constant 0 : i32
    %c0_i32_0 = arith.constant 0 : i32
    %c0_i32_1 = arith.constant 0 : i32
    return %c0_i32, %c0_i32_0 : i32, i32
  }
  func.func @transform_5(%arg0: i32) -> (i32, i32) {
    %c0_i32 = arith.constant 0 : i32
    %c0_i32_0 = arith.constant 0 : i32
    %c0_i32_1 = arith.constant 0 : i32
    return %c0_i32, %c0_i32_0 : i32, i32
  }
}

</mosaic_0001>

<llo_original>
// kernel: tpu_custom_call.1
$region0: #{tpu_custom_call.1}
  #allocation0 [shape = 'u32[]', space=smem, size = 0x4, offset = 0x4, fixed_abs, tag = 'smem constant byte address 0x4 - core index']
  #allocation1 [shape = 'u32[144,128]{1,0:T(1,128)}', space=vmem, size = 0x12000, scoped, tag = 'internal scratch']
  #allocation2 [shape = 'f32[32,512]{1,0:T(8,128)}', space=vmem, size = 0x10000, scoped, tag = 'scratch operand']
  %s0 = inlined_call_operand.vmem [shape: f32[8,256], index: 0, kind: input, shape index: {}]
  %s1 = inlined_call_operand.vmem [shape: f32[32,4], index: 1, kind: input, shape index: {}]
  %s2 = inlined_call_operand.vmem [shape: f32[32,1], index: 2, kind: input, shape index: {}]
  %s3 = inlined_call_operand.vmem [shape: f32[4,32], index: 3, kind: input, shape index: {}]
  %s4 = inlined_call_operand.vmem [shape: f32[4,1], index: 4, kind: input, shape index: {}]
  %s5 = inlined_call_operand.hbm [shape: f32[8,256], index: 5, kind: output, shape index: {}]
  %s6 = sld [smem:[#allocation0]]
  $region30: #{tpu_custom_call.1} parent=0
    _
  %s8 = ssub.s32 1, %s6
  %s9 = scalar_select 0, %s8, %s6
  $region1: #{tpu_custom_call.1} parent=0
    #allocation3 [shape = 'u8[8192]{0}', space=vmem, size = 0x2000, scoped, tag = 'output window, operand 0, single buffered']
    #allocation4 [shape = 's32[1]{0}', space=sflag, size = 0x4, scoped, tag = 'scoped memory for tpu_custom_call.1']
    %10 = vsyncpa [#allocation4], 0
    // Predicated region
    $region2: #{tpu_custom_call.1} parent=1 // pred_check
      _
    $region3: #{tpu_custom_call.1} parent=1 // pred_check_branch
      %12 = sbr.rel (0) target = $region5
    $region4: #{tpu_custom_call.1} parent=1 // pred_region
      _
    $region5: #{tpu_custom_call.1} parent=1 // pred_fallthru
      _
    // Predicated region
    $region6: #{tpu_custom_call.1} parent=1 // pred_check
      _
    $region7: #{tpu_custom_call.1} parent=1 // pred_check_branch
      %14 = sbr.rel (0) target = $region9
    $region8: #{tpu_custom_call.1} parent=1 // pred_region
      _
    $region9: #{tpu_custom_call.1} parent=1 // pred_fallthru
      _
    // Predicated region
    $region10: #{tpu_custom_call.1} parent=1 // pred_check
      _
    $region11: #{tpu_custom_call.1} parent=1 // pred_check_branch
      %16 = sbr.rel (0) target = $region13
    $region12: #{tpu_custom_call.1} parent=1 // pred_region
      _
    $region13: #{tpu_custom_call.1} parent=1 // pred_fallthru
      _
    // Predicated region
    $region14: #{tpu_custom_call.1} parent=1 // pred_check
      _
    $region15: #{tpu_custom_call.1} parent=1 // pred_check_branch
      %18 = sbr.rel (0) target = $region17
    $region16: #{tpu_custom_call.1} parent=1 // pred_region
      _
    $region17: #{tpu_custom_call.1} parent=1 // pred_fallthru
      _
    // Predicated region
    $region18: #{tpu_custom_call.1} parent=1 // pred_check
      _
    $region19: #{tpu_custom_call.1} parent=1 // pred_check_branch
      %20 = sbr.rel (0) target = $region21
    $region20: #{tpu_custom_call.1} parent=1 // pred_region
      _
    $region21: #{tpu_custom_call.1} parent=1 // pred_fallthru
      _
    %v21 = vld [vmem:[%s0] sm:$0xf]
    %v22 = vld [vmem:[%s0 + $0x8] sm:$0xf]
    %v23 = vld [vmem:[%s0] sm:$0xf0]
    %v24 = vld [vmem:[%s0 + $0x8] sm:$0xf0]
    %v27 = vrot.slane %v23, 4
    %v28 = vrot.slane %v24, 4
    %v29 = vld [vmem:[%s1] sm:$0xff]
    %v30 = vld [vmem:[%s1 + $0x8] sm:$0xff]
    %v31 = vld [vmem:[%s1 + $0x10] sm:$0xff]
    %v32 = vld [vmem:[%s1 + $0x18] sm:$0xff]
    %vm33 = vcmask 31744
    %v35 = vsel %vm33, %v29, 0
    %v38 = vsel %vm33, %v30, 0
    %v41 = vsel %vm33, %v31, 0
    %v44 = vsel %vm33, %v32, 0
    %vm46 = vcmask 1043456
    %v48 = vsel %vm46, %v21, 0
    %v51 = vsel %vm46, %v22, 0
    %v53 = vsel %vm46, %v27, 0
    %v55 = vsel %vm46, %v28, 0
    %57 = vmatprep.subr.mxu0 0.0
    %58 = vmatpush1.msra.mxu0 0.0
    %59 = vmatprep.subr.mxu0 0.0
    %60 = vmatpush1.msra.mxu0 0.0
    %61 = vmatprep.subr.mxu0 0.0
    %62 = vmatpush1.msra.mxu0 0.0
    %63 = vmatprep.subr.mxu0 0.0
    %64 = vmatpush1.msra.mxu0 0.0
    %65 = vmatprep.subr.mxu0 0.0
    %66 = vmatpush1.msra.mxu0 0.0
    %67 = vmatprep.subr.mxu0 0.0
    %68 = vmatpush1.msra.mxu0 0.0
    %69 = vmatprep.subr.mxu0 0.0
    %70 = vmatpush1.msra.mxu0 0.0
    %71 = vmatprep.subr.mxu0 0.0
    %72 = vmatpush1.msra.mxu0 0.0
    %73 = vmatprep.subr.mxu0 0.0
    %74 = vmatpush1.msra.mxu0 0.0
    %75 = vmatprep.subr.mxu0 0.0
    %76 = vmatpush1.msra.mxu0 0.0
    %77 = vmatprep.subr.mxu0 0.0
    %78 = vmatpush1.msra.mxu0 0.0
    %79 = vmatprep.subr.mxu0 0.0
    %80 = vmatpush1.msra.mxu0 0.0
    %81 = vmatprep.subr.mxu0 0.0
    %82 = vmatpush1.msra.mxu0 0.0
    %83 = vmatprep.subr.mxu0 0.0
    %84 = vmatpush1.msra.mxu0 0.0
    %85 = vmatprep.subr.mxu0 0.0
    %86 = vmatpush1.msra.mxu0 0.0
    %87 = vmatprep.subr.mxu0 %v51
    %88 = vmatpush1.msra.mxu0 %v48
    %89 = vmatprep.subr.mxu0 0.0
    %90 = vmatpush2.msra.mxu0 0.0
    %91 = vmatprep.subr.mxu0 0.0
    %92 = vmatpush2.msra.mxu0 0.0
    %93 = vmatprep.subr.mxu0 0.0
    %94 = vmatpush2.msra.mxu0 0.0
    %95 = vmatprep.subr.mxu0 0.0
    %96 = vmatpush2.msra.mxu0 0.0
    %97 = vmatprep.subr.mxu0 0.0
    %98 = vmatpush2.msra.mxu0 0.0
    %99 = vmatprep.subr.mxu0 0.0
    %100 = vmatpush2.msra.mxu0 0.0
    %101 = vmatprep.subr.mxu0 0.0
    %102 = vmatpush2.msra.mxu0 0.0
    %103 = vmatprep.subr.mxu0 0.0
    %104 = vmatpush2.msra.mxu0 0.0
    %105 = vmatprep.subr.mxu0 0.0
    %106 = vmatpush2.msra.mxu0 0.0
    %107 = vmatprep.subr.mxu0 0.0
    %108 = vmatpush2.msra.mxu0 0.0
    %109 = vmatprep.subr.mxu0 0.0
    %110 = vmatpush2.msra.mxu0 0.0
    %111 = vmatprep.subr.mxu0 0.0
    %112 = vmatpush2.msra.mxu0 0.0
    %113 = vmatprep.subr.mxu0 0.0
    %114 = vmatpush2.msra.mxu0 0.0
    %115 = vmatprep.subr.mxu0 0.0
    %116 = vmatpush2.msra.mxu0 0.0
    %117 = vmatprep.subr.mxu0 0.0
    %118 = vmatpush2.msra.mxu0 0.0
    %119 = vmatprep.subr.mxu0 0.0
    %120 = vmatpush2.msra.mxu0 0.0
    %121 = vmatprep.mubr.f32.mxu0 0.0
    %122 = vmatmul.mubr.f32.gmra.mxu0 %v35
    %v123 = vpop.f32.mrf.mxu0
    %v124 = vadd.f32 0.0, %v123
    %v125 = vpop.f32.mrf.mxu0
    %v126 = vadd.f32 0.0, %v125
    %127 = vmatprep.mubr.f32.mxu0 0.0
    %128 = vmatmul.mubr.f32.gmra.mxu0 %v38
    %v129 = vpop.f32.mrf.mxu0
    %v130 = vadd.f32 0.0, %v129
    %v131 = vpop.f32.mrf.mxu0
    %v132 = vadd.f32 0.0, %v131
    %133 = vmatprep.mubr.f32.mxu0 0.0
    %134 = vmatmul.mubr.f32.gmra.mxu0 %v41
    %v135 = vpop.f32.mrf.mxu0
    %v136 = vadd.f32 0.0, %v135
    %v137 = vpop.f32.mrf.mxu0
    %v138 = vadd.f32 0.0, %v137
    %139 = vmatprep.mubr.f32.mxu0 0.0
    %140 = vmatmul.mubr.f32.gmra.mxu0 %v44
    %v141 = vpop.f32.mrf.mxu0
    %v142 = vadd.f32 0.0, %v141
    %v143 = vpop.f32.mrf.mxu0
    %v144 = vadd.f32 0.0, %v143
    %145 = vdwg.mxu0
    %146 = vmatprep.subr.mxu0 0.0
    %147 = vmatpush1.msra.mxu0 0.0
    %148 = vmatprep.subr.mxu0 0.0
    %149 = vmatpush1.msra.mxu0 0.0
    %150 = vmatprep.subr.mxu0 0.0
    %151 = vmatpush1.msra.mxu0 0.0
    %152 = vmatprep.subr.mxu0 0.0
    %153 = vmatpush1.msra.mxu0 0.0
    %154 = vmatprep.subr.mxu0 0.0
    %155 = vmatpush1.msra.mxu0 0.0
    %156 = vmatprep.subr.mxu0 0.0
    %157 = vmatpush1.msra.mxu0 0.0
    %158 = vmatprep.subr.mxu0 0.0
    %159 = vmatpush1.msra.mxu0 0.0
    %160 = vmatprep.subr.mxu0 0.0
    %161 = vmatpush1.msra.mxu0 0.0
    %162 = vmatprep.subr.mxu0 0.0
    %163 = vmatpush1.msra.mxu0 0.0
    %164 = vmatprep.subr.mxu0 0.0
    %165 = vmatpush1.msra.mxu0 0.0
    %166 = vmatprep.subr.mxu0 0.0
    %167 = vmatpush1.msra.mxu0 0.0
    %168 = vmatprep.subr.mxu0 0.0
    %169 = vmatpush1.msra.mxu0 0.0
    %170 = vmatprep.subr.mxu0 0.0
    %171 = vmatpush1.msra.mxu0 0.0
    %172 = vmatprep.subr.mxu0 0.0
    %173 = vmatpush1.msra.mxu0 0.0
    %174 = vmatprep.subr.mxu0 0.0
    %175 = vmatpush1.msra.mxu0 0.0
    %176 = vmatprep.subr.mxu0 %v55
    %177 = vmatpush1.msra.mxu0 %v53
    %178 = vmatprep.subr.mxu0 0.0
    %179 = vmatpush2.msra.mxu0 0.0
    %180 = vmatprep.subr.mxu0 0.0
    %181 = vmatpush2.msra.mxu0 0.0
    %182 = vmatprep.subr.mxu0 0.0
    %183 = vmatpush2.msra.mxu0 0.0
    %184 = vmatprep.subr.mxu0 0.0
    %185 = vmatpush2.msra.mxu0 0.0
    %186 = vmatprep.subr.mxu0 0.0
    %187 = vmatpush2.msra.mxu0 0.0
    %188 = vmatprep.subr.mxu0 0.0
    %189 = vmatpush2.msra.mxu0 0.0
    %190 = vmatprep.subr.mxu0 0.0
    %191 = vmatpush2.msra.mxu0 0.0
    %192 = vmatprep.subr.mxu0 0.0
    %193 = vmatpush2.msra.mxu0 0.0
    %194 = vmatprep.subr.mxu0 0.0
    %195 = vmatpush2.msra.mxu0 0.0
    %196 = vmatprep.subr.mxu0 0.0
    %197 = vmatpush2.msra.mxu0 0.0
    %198 = vmatprep.subr.mxu0 0.0
    %199 = vmatpush2.msra.mxu0 0.0
    %200 = vmatprep.subr.mxu0 0.0
    %201 = vmatpush2.msra.mxu0 0.0
    %202 = vmatprep.subr.mxu0 0.0
    %203 = vmatpush2.msra.mxu0 0.0
    %204 = vmatprep.subr.mxu0 0.0
    %205 = vmatpush2.msra.mxu0 0.0
    %206 = vmatprep.subr.mxu0 0.0
    %207 = vmatpush2.msra.mxu0 0.0
    %208 = vmatprep.subr.mxu0 0.0
    %209 = vmatpush2.msra.mxu0 0.0
    %210 = vmatprep.mubr.f32.mxu0 0.0
    %211 = vmatmul.mubr.f32.gmra.mxu0 %v35
    %v212 = vpop.f32.mrf.mxu0
    %v213 = vadd.f32 0.0, %v212
    %v214 = vpop.f32.mrf.mxu0
    %v215 = vadd.f32 0.0, %v214
    %216 = vmatprep.mubr.f32.mxu0 0.0
    %217 = vmatmul.mubr.f32.gmra.mxu0 %v38
    %v218 = vpop.f32.mrf.mxu0
    %v219 = vadd.f32 0.0, %v218
    %v220 = vpop.f32.mrf.mxu0
    %v221 = vadd.f32 0.0, %v220
    %222 = vmatprep.mubr.f32.mxu0 0.0
    %223 = vmatmul.mubr.f32.gmra.mxu0 %v41
    %v224 = vpop.f32.mrf.mxu0
    %v225 = vadd.f32 0.0, %v224
    %v226 = vpop.f32.mrf.mxu0
    %v227 = vadd.f32 0.0, %v226
    %228 = vmatprep.mubr.f32.mxu0 0.0
    %229 = vmatmul.mubr.f32.gmra.mxu0 %v44
    %v230 = vpop.f32.mrf.mxu0
    %v231 = vadd.f32 0.0, %v230
    %v232 = vpop.f32.mrf.mxu0
    %v233 = vadd.f32 0.0, %v232
    %234 = vdwg.mxu0
    %235 = vst [vmem:[#allocation2] sm:$0xff] %v124
    %236 = vst [vmem:[#allocation2 + $0x8] sm:$0xff] %v126
    %237 = vst [vmem:[#allocation2 + $0x10] sm:$0xff] %v213
    %238 = vst [vmem:[#allocation2 + $0x18] sm:$0xff] %v215
    %239 = vst [vmem:[#allocation2 + $0x20] sm:$0xff] %v130
    %240 = vst [vmem:[#allocation2 + $0x28] sm:$0xff] %v132
    %241 = vst [vmem:[#allocation2 + $0x30] sm:$0xff] %v219
    %242 = vst [vmem:[#allocation2 + $0x38] sm:$0xff] %v221
    %243 = vst [vmem:[#allocation2 + $0x40] sm:$0xff] %v136
    %244 = vst [vmem:[#allocation2 + $0x48] sm:$0xff] %v138
    %245 = vst [vmem:[#allocation2 + $0x50] sm:$0xff] %v225
    %246 = vst [vmem:[#allocation2 + $0x58] sm:$0xff] %v227
    %247 = vst [vmem:[#allocation2 + $0x60] sm:$0xff] %v142
    %248 = vst [vmem:[#allocation2 + $0x68] sm:$0xff] %v144
    %249 = vst [vmem:[#allocation2 + $0x70] sm:$0xff] %v231
    %250 = vst [vmem:[#allocation2 + $0x78] sm:$0xff] %v233
    %v251 = vld [vmem:[#allocation2] sm:$0xff]
    %v252 = vld [vmem:[#allocation2 + $0x8] sm:$0xff]
    %v253 = vld [vmem:[#allocation2 + $0x10] sm:$0xff]
    %v254 = vld [vmem:[#allocation2 + $0x18] sm:$0xff]
    %v255 = vld [vmem:[%s2] sm:$0xff]
    %257 = vset.pattern.permute.xlu0 0
    %258 = vperm.xlu0 %257, %v255
    %v259 = vpop.permute.xlu0 %258
    %v261 = vadd.f32 %v251, %v259
    %v262 = vadd.f32 %v252, %v259
    %v263 = vadd.f32 %v253, %v259
    %v264 = vadd.f32 %v254, %v259
    %v265 = vmul.f32 %v261, 0.5
    %v266 = vmul.f32 %v262, 0.5
    %v267 = vmul.f32 %v263, 0.5
    %v268 = vmul.f32 %v264, 0.5
    %v269 = vmul.f32 %v261, 0.70710677
    %v270 = vmul.f32 %v262, 0.70710677
    %v271 = vmul.f32 %v263, 0.70710677
    %v272 = vmul.f32 %v264, 0.70710677
    %v273 = vand.u32 2147483647, %v269
    %v274 = vand.u32 2147483647, %v270
    %v275 = vand.u32 2147483647, %v271
    %v276 = vand.u32 2147483647, %v272
    %v277 = vmul.f32 %v273, 0.3275911
    %v278 = vmul.f32 %v274, 0.3275911
    %v279 = vmul.f32 %v275, 0.3275911
    %v280 = vmul.f32 %v276, 0.3275911
    %v281 = vadd.f32 %v277, 1.0
    %v282 = vadd.f32 %v278, 1.0
    %v283 = vadd.f32 %v279, 1.0
    %v284 = vadd.f32 %v280, 1.0
    %v285 = vrcp.pop %v281
    %v286 = vmul.f32 1.0, %v285
    %v287 = vrcp.pop %v282
    %v288 = vmul.f32 1.0, %v287
    %v289 = vrcp.pop %v283
    %v290 = vmul.f32 1.0, %v289
    %v291 = vrcp.pop %v284
    %v292 = vmul.f32 1.0, %v291
    %v293 = vmul.f32 %v286, 1.0614054
    %v294 = vmul.f32 %v288, 1.0614054
    %v295 = vmul.f32 %v290, 1.0614054
    %v296 = vmul.f32 %v292, 1.0614054
    %v297 = vadd.f32 %v293, -1.4531521
    %v298 = vadd.f32 %v294, -1.4531521
    %v299 = vadd.f32 %v295, -1.4531521
    %v300 = vadd.f32 %v296, -1.4531521
    %v301 = vmul.f32 %v297, %v286
    %v302 = vmul.f32 %v298, %v288
    %v303 = vmul.f32 %v299, %v290
    %v304 = vmul.f32 %v300, %v292
    %v305 = vadd.f32 %v301, 1.4214138
    %v306 = vadd.f32 %v302, 1.4214138
    %v307 = vadd.f32 %v303, 1.4214138
    %v308 = vadd.f32 %v304, 1.4214138
    %v309 = vmul.f32 %v305, %v286
    %v310 = vmul.f32 %v306, %v288
    %v311 = vmul.f32 %v307, %v290
    %v312 = vmul.f32 %v308, %v292
    %v313 = vadd.f32 %v309, -0.28449672
    %v314 = vadd.f32 %v310, -0.28449672
    %v315 = vadd.f32 %v311, -0.28449672
    %v316 = vadd.f32 %v312, -0.28449672
    %v317 = vmul.f32 %v313, %v286
    %v318 = vmul.f32 %v314, %v288
    %v319 = vmul.f32 %v315, %v290
    %v320 = vmul.f32 %v316, %v292
    %v321 = vadd.f32 %v317, 0.2548296
    %v322 = vadd.f32 %v318, 0.2548296
    %v323 = vadd.f32 %v319, 0.2548296
    %v324 = vadd.f32 %v320, 0.2548296
    %v325 = vmul.f32 %v321, %v286
    %v326 = vmul.f32 %v322, %v288
    %v327 = vmul.f32 %v323, %v290
    %v328 = vmul.f32 %v324, %v292
    %v329 = vsub.f32 0.0, %v273
    %v330 = vsub.f32 0.0, %v274
    %v331 = vsub.f32 0.0, %v275
    %v332 = vsub.f32 0.0, %v276
    %v333 = vmul.f32 %v329, %v273
    %v334 = vmul.f32 %v330, %v274
    %v335 = vmul.f32 %v331, %v275
    %v336 = vmul.f32 %v332, %v276
    %v337 = vmul.f32 %v333, 1.442695
    %v338 = vpow.pop %v337
    %v339 = vmul.f32 %v334, 1.442695
    %v340 = vpow.pop %v339
    %v341 = vmul.f32 %v335, 1.442695
    %v342 = vpow.pop %v341
    %v343 = vmul.f32 %v336, 1.442695
    %v344 = vpow.pop %v343
    %v345 = vmul.f32 %v325, %v338
    %v346 = vmul.f32 %v326, %v340
    %v347 = vmul.f32 %v327, %v342
    %v348 = vmul.f32 %v328, %v344
    %v349 = vsub.f32 1.0, %v345
    %v350 = vsub.f32 1.0, %v346
    %v351 = vsub.f32 1.0, %v347
    %v352 = vsub.f32 1.0, %v348
    %vm353 = vcmp.lt.f32.partialorder %v269, 0.0
    %vm354 = vcmp.lt.f32.partialorder %v270, 0.0
    %vm355 = vcmp.lt.f32.partialorder %v271, 0.0
    %vm356 = vcmp.lt.f32.partialorder %v272, 0.0
    %v357 = vsub.f32 0.0, %v349
    %v358 = vsub.f32 0.0, %v350
    %v359 = vsub.f32 0.0, %v351
    %v360 = vsub.f32 0.0, %v352
    %v361 = vsel %vm353, %v357, %v349
    %v362 = vsel %vm354, %v358, %v350
    %v363 = vsel %vm355, %v359, %v351
    %v364 = vsel %vm356, %v360, %v352
    %v365 = vadd.f32 %v361, 1.0
    %v366 = vadd.f32 %v362, 1.0
    %v367 = vadd.f32 %v363, 1.0
    %v368 = vadd.f32 %v364, 1.0
    %v369 = vmul.f32 %v265, %v365
    %v370 = vmul.f32 %v266, %v366
    %v371 = vmul.f32 %v267, %v367
    %v372 = vmul.f32 %v268, %v368
    %373 = vst [vmem:[#allocation2] sm:$0xff] %v369
    %374 = vst [vmem:[#allocation2 + $0x8] sm:$0xff] %v370
    %375 = vst [vmem:[#allocation2 + $0x10] sm:$0xff] %v371
    %376 = vst [vmem:[#allocation2 + $0x18] sm:$0xff] %v372
    %v377 = vld [vmem:[#allocation2 + $0x20] sm:$0xff]
    %v378 = vld [vmem:[#allocation2 + $0x28] sm:$0xff]
    %v379 = vld [vmem:[#allocation2 + $0x30] sm:$0xff]
    %v380 = vld [vmem:[#allocation2 + $0x38] sm:$0xff]
    %v381 = vld [vmem:[%s2 + $0x8] sm:$0xff]
    %383 = vset.pattern.permute.xlu0 0
    %384 = vperm.xlu0 %383, %v381
    %v385 = vpop.permute.xlu0 %384
    %v387 = vadd.f32 %v377, %v385
    %v388 = vadd.f32 %v378, %v385
    %v389 = vadd.f32 %v379, %v385
    %v390 = vadd.f32 %v380, %v385
    %v391 = vmul.f32 %v387, 0.5
    %v392 = vmul.f32 %v388, 0.5
    %v393 = vmul.f32 %v389, 0.5
    %v394 = vmul.f32 %v390, 0.5
    %v395 = vmul.f32 %v387, 0.70710677
    %v396 = vmul.f32 %v388, 0.70710677
    %v397 = vmul.f32 %v389, 0.70710677
    %v398 = vmul.f32 %v390, 0.70710677
    %v399 = vand.u32 2147483647, %v395
    %v400 = vand.u32 2147483647, %v396
    %v401 = vand.u32 2147483647, %v397
    %v402 = vand.u32 2147483647, %v398
    %v403 = vmul.f32 %v399, 0.3275911
    %v404 = vmul.f32 %v400, 0.3275911
    %v405 = vmul.f32 %v401, 0.3275911
    %v406 = vmul.f32 %v402, 0.3275911
    %v407 = vadd.f32 %v403, 1.0
    %v408 = vadd.f32 %v404, 1.0
    %v409 = vadd.f32 %v405, 1.0
    %v410 = vadd.f32 %v406, 1.0
    %v411 = vrcp.pop %v407
    %v412 = vmul.f32 1.0, %v411
    %v413 = vrcp.pop %v408
    %v414 = vmul.f32 1.0, %v413
    %v415 = vrcp.pop %v409
    %v416 = vmul.f32 1.0, %v415
    %v417 = vrcp.pop %v410
    %v418 = vmul.f32 1.0, %v417
    %v419 = vmul.f32 %v412, 1.0614054
    %v420 = vmul.f32 %v414, 1.0614054
    %v421 = vmul.f32 %v416, 1.0614054
    %v422 = vmul.f32 %v418, 1.0614054
    %v423 = vadd.f32 %v419, -1.4531521
    %v424 = vadd.f32 %v420, -1.4531521
    %v425 = vadd.f32 %v421, -1.4531521
    %v426 = vadd.f32 %v422, -1.4531521
    %v427 = vmul.f32 %v423, %v412
    %v428 = vmul.f32 %v424, %v414
    %v429 = vmul.f32 %v425, %v416
    %v430 = vmul.f32 %v426, %v418
    %v431 = vadd.f32 %v427, 1.4214138
    %v432 = vadd.f32 %v428, 1.4214138
    %v433 = vadd.f32 %v429, 1.4214138
    %v434 = vadd.f32 %v430, 1.4214138
    %v435 = vmul.f32 %v431, %v412
    %v436 = vmul.f32 %v432, %v414
    %v437 = vmul.f32 %v433, %v416
    %v438 = vmul.f32 %v434, %v418
    %v439 = vadd.f32 %v435, -0.28449672
    %v440 = vadd.f32 %v436, -0.28449672
    %v441 = vadd.f32 %v437, -0.28449672
    %v442 = vadd.f32 %v438, -0.28449672
    %v443 = vmul.f32 %v439, %v412
    %v444 = vmul.f32 %v440, %v414
    %v445 = vmul.f32 %v441, %v416
    %v446 = vmul.f32 %v442, %v418
    %v447 = vadd.f32 %v443, 0.2548296
    %v448 = vadd.f32 %v444, 0.2548296
    %v449 = vadd.f32 %v445, 0.2548296
    %v450 = vadd.f32 %v446, 0.2548296
    %v451 = vmul.f32 %v447, %v412
    %v452 = vmul.f32 %v448, %v414
    %v453 = vmul.f32 %v449, %v416
    %v454 = vmul.f32 %v450, %v418
    %v455 = vsub.f32 0.0, %v399
    %v456 = vsub.f32 0.0, %v400
    %v457 = vsub.f32 0.0, %v401
    %v458 = vsub.f32 0.0, %v402
    %v459 = vmul.f32 %v455, %v399
    %v460 = vmul.f32 %v456, %v400
    %v461 = vmul.f32 %v457, %v401
    %v462 = vmul.f32 %v458, %v402
    %v463 = vmul.f32 %v459, 1.442695
    %v464 = vpow.pop %v463
    %v465 = vmul.f32 %v460, 1.442695
    %v466 = vpow.pop %v465
    %v467 = vmul.f32 %v461, 1.442695
    %v468 = vpow.pop %v467
    %v469 = vmul.f32 %v462, 1.442695
    %v470 = vpow.pop %v469
    %v471 = vmul.f32 %v451, %v464
    %v472 = vmul.f32 %v452, %v466
    %v473 = vmul.f32 %v453, %v468
    %v474 = vmul.f32 %v454, %v470
    %v475 = vsub.f32 1.0, %v471
    %v476 = vsub.f32 1.0, %v472
    %v477 = vsub.f32 1.0, %v473
    %v478 = vsub.f32 1.0, %v474
    %vm479 = vcmp.lt.f32.partialorder %v395, 0.0
    %vm480 = vcmp.lt.f32.partialorder %v396, 0.0
    %vm481 = vcmp.lt.f32.partialorder %v397, 0.0
    %vm482 = vcmp.lt.f32.partialorder %v398, 0.0
    %v483 = vsub.f32 0.0, %v475
    %v484 = vsub.f32 0.0, %v476
    %v485 = vsub.f32 0.0, %v477
    %v486 = vsub.f32 0.0, %v478
    %v487 = vsel %vm479, %v483, %v475
    %v488 = vsel %vm480, %v484, %v476
    %v489 = vsel %vm481, %v485, %v477
    %v490 = vsel %vm482, %v486, %v478
    %v491 = vadd.f32 %v487, 1.0
    %v492 = vadd.f32 %v488, 1.0
    %v493 = vadd.f32 %v489, 1.0
    %v494 = vadd.f32 %v490, 1.0
    %v495 = vmul.f32 %v391, %v491
    %v496 = vmul.f32 %v392, %v492
    %v497 = vmul.f32 %v393, %v493
    %v498 = vmul.f32 %v394, %v494
    %499 = vst [vmem:[#allocation2 + $0x20] sm:$0xff] %v495
    %500 = vst [vmem:[#allocation2 + $0x28] sm:$0xff] %v496
    %501 = vst [vmem:[#allocation2 + $0x30] sm:$0xff] %v497
    %502 = vst [vmem:[#allocation2 + $0x38] sm:$0xff] %v498
    %v503 = vld [vmem:[#allocation2 + $0x40] sm:$0xff]
    %v504 = vld [vmem:[#allocation2 + $0x48] sm:$0xff]
    %v505 = vld [vmem:[#allocation2 + $0x50] sm:$0xff]
    %v506 = vld [vmem:[#allocation2 + $0x58] sm:$0xff]
    %v507 = vld [vmem:[%s2 + $0x10] sm:$0xff]
    %509 = vset.pattern.permute.xlu0 0
    %510 = vperm.xlu0 %509, %v507
    %v511 = vpop.permute.xlu0 %510
    %v513 = vadd.f32 %v503, %v511
    %v514 = vadd.f32 %v504, %v511
    %v515 = vadd.f32 %v505, %v511
    %v516 = vadd.f32 %v506, %v511
    %v517 = vmul.f32 %v513, 0.5
    %v518 = vmul.f32 %v514, 0.5
    %v519 = vmul.f32 %v515, 0.5
    %v520 = vmul.f32 %v516, 0.5
    %v521 = vmul.f32 %v513, 0.70710677
    %v522 = vmul.f32 %v514, 0.70710677
    %v523 = vmul.f32 %v515, 0.70710677
    %v524 = vmul.f32 %v516, 0.70710677
    %v525 = vand.u32 2147483647, %v521
    %v526 = vand.u32 2147483647, %v522
    %v527 = vand.u32 2147483647, %v523
    %v528 = vand.u32 2147483647, %v524
    %v529 = vmul.f32 %v525, 0.3275911
    %v530 = vmul.f32 %v526, 0.3275911
    %v531 = vmul.f32 %v527, 0.3275911
    %v532 = vmul.f32 %v528, 0.3275911
    %v533 = vadd.f32 %v529, 1.0
    %v534 = vadd.f32 %v530, 1.0
    %v535 = vadd.f32 %v531, 1.0
    %v536 = vadd.f32 %v532, 1.0
    %v537 = vrcp.pop %v533
    %v538 = vmul.f32 1.0, %v537
    %v539 = vrcp.pop %v534
    %v540 = vmul.f32 1.0, %v539
    %v541 = vrcp.pop %v535
    %v542 = vmul.f32 1.0, %v541
    %v543 = vrcp.pop %v536
    %v544 = vmul.f32 1.0, %v543
    %v545 = vmul.f32 %v538, 1.0614054
    %v546 = vmul.f32 %v540, 1.0614054
    %v547 = vmul.f32 %v542, 1.0614054
    %v548 = vmul.f32 %v544, 1.0614054
    %v549 = vadd.f32 %v545, -1.4531521
    %v550 = vadd.f32 %v546, -1.4531521
    %v551 = vadd.f32 %v547, -1.4531521
    %v552 = vadd.f32 %v548, -1.4531521
    %v553 = vmul.f32 %v549, %v538
    %v554 = vmul.f32 %v550, %v540
    %v555 = vmul.f32 %v551, %v542
    %v556 = vmul.f32 %v552, %v544
    %v557 = vadd.f32 %v553, 1.4214138
    %v558 = vadd.f32 %v554, 1.4214138
    %v559 = vadd.f32 %v555, 1.4214138
    %v560 = vadd.f32 %v556, 1.4214138
    %v561 = vmul.f32 %v557, %v538
    %v562 = vmul.f32 %v558, %v540
    %v563 = vmul.f32 %v559, %v542
    %v564 = vmul.f32 %v560, %v544
    %v565 = vadd.f32 %v561, -0.28449672
    %v566 = vadd.f32 %v562, -0.28449672
    %v567 = vadd.f32 %v563, -0.28449672
    %v568 = vadd.f32 %v564, -0.28449672
    %v569 = vmul.f32 %v565, %v538
    %v570 = vmul.f32 %v566, %v540
    %v571 = vmul.f32 %v567, %v542
    %v572 = vmul.f32 %v568, %v544
    %v573 = vadd.f32 %v569, 0.2548296
    %v574 = vadd.f32 %v570, 0.2548296
    %v575 = vadd.f32 %v571, 0.2548296
    %v576 = vadd.f32 %v572, 0.2548296
    %v577 = vmul.f32 %v573, %v538
    %v578 = vmul.f32 %v574, %v540
    %v579 = vmul.f32 %v575, %v542
    %v580 = vmul.f32 %v576, %v544
    %v581 = vsub.f32 0.0, %v525
    %v582 = vsub.f32 0.0, %v526
    %v583 = vsub.f32 0.0, %v527
    %v584 = vsub.f32 0.0, %v528
    %v585 = vmul.f32 %v581, %v525
    %v586 = vmul.f32 %v582, %v526
    %v587 = vmul.f32 %v583, %v527
    %v588 = vmul.f32 %v584, %v528
    %v589 = vmul.f32 %v585, 1.442695
    %v590 = vpow.pop %v589
    %v591 = vmul.f32 %v586, 1.442695
    %v592 = vpow.pop %v591
    %v593 = vmul.f32 %v587, 1.442695
    %v594 = vpow.pop %v593
    %v595 = vmul.f32 %v588, 1.442695
    %v596 = vpow.pop %v595
    %v597 = vmul.f32 %v577, %v590
    %v598 = vmul.f32 %v578, %v592
    %v599 = vmul.f32 %v579, %v594
    %v600 = vmul.f32 %v580, %v596
    %v601 = vsub.f32 1.0, %v597
    %v602 = vsub.f32 1.0, %v598
    %v603 = vsub.f32 1.0, %v599
    %v604 = vsub.f32 1.0, %v600
    %vm605 = vcmp.lt.f32.partialorder %v521, 0.0
    %vm606 = vcmp.lt.f32.partialorder %v522, 0.0
    %vm607 = vcmp.lt.f32.partialorder %v523, 0.0
    %vm608 = vcmp.lt.f32.partialorder %v524, 0.0
    %v609 = vsub.f32 0.0, %v601
    %v610 = vsub.f32 0.0, %v602
    %v611 = vsub.f32 0.0, %v603
    %v612 = vsub.f32 0.0, %v604
    %v613 = vsel %vm605, %v609, %v601
    %v614 = vsel %vm606, %v610, %v602
    %v615 = vsel %vm607, %v611, %v603
    %v616 = vsel %vm608, %v612, %v604
    %v617 = vadd.f32 %v613, 1.0
    %v618 = vadd.f32 %v614, 1.0
    %v619 = vadd.f32 %v615, 1.0
    %v620 = vadd.f32 %v616, 1.0
    %v621 = vmul.f32 %v517, %v617
    %v622 = vmul.f32 %v518, %v618
    %v623 = vmul.f32 %v519, %v619
    %v624 = vmul.f32 %v520, %v620
    %625 = vst [vmem:[#allocation2 + $0x40] sm:$0xff] %v621
    %626 = vst [vmem:[#allocation2 + $0x48] sm:$0xff] %v622
    %627 = vst [vmem:[#allocation2 + $0x50] sm:$0xff] %v623
    %628 = vst [vmem:[#allocation2 + $0x58] sm:$0xff] %v624
    %v629 = vld [vmem:[#allocation2 + $0x60] sm:$0xff]
    %v630 = vld [vmem:[#allocation2 + $0x68] sm:$0xff]
    %v631 = vld [vmem:[#allocation2 + $0x70] sm:$0xff]
    %v632 = vld [vmem:[#allocation2 + $0x78] sm:$0xff]
    %v633 = vld [vmem:[%s2 + $0x18] sm:$0xff]
    %635 = vset.pattern.permute.xlu0 0
    %636 = vperm.xlu0 %635, %v633
    %v637 = vpop.permute.xlu0 %636
    %v639 = vadd.f32 %v629, %v637
    %v640 = vadd.f32 %v630, %v637
    %v641 = vadd.f32 %v631, %v637
    %v642 = vadd.f32 %v632, %v637
    %v643 = vmul.f32 %v639, 0.5
    %v644 = vmul.f32 %v640, 0.5
    %v645 = vmul.f32 %v641, 0.5
    %v646 = vmul.f32 %v642, 0.5
    %v647 = vmul.f32 %v639, 0.70710677
    %v648 = vmul.f32 %v640, 0.70710677
    %v649 = vmul.f32 %v641, 0.70710677
    %v650 = vmul.f32 %v642, 0.70710677
    %v651 = vand.u32 2147483647, %v647
    %v652 = vand.u32 2147483647, %v648
    %v653 = vand.u32 2147483647, %v649
    %v654 = vand.u32 2147483647, %v650
    %v655 = vmul.f32 %v651, 0.3275911
    %v656 = vmul.f32 %v652, 0.3275911
    %v657 = vmul.f32 %v653, 0.3275911
    %v658 = vmul.f32 %v654, 0.3275911
    %v659 = vadd.f32 %v655, 1.0
    %v660 = vadd.f32 %v656, 1.0
    %v661 = vadd.f32 %v657, 1.0
    %v662 = vadd.f32 %v658, 1.0
    %v663 = vrcp.pop %v659
    %v664 = vmul.f32 1.0, %v663
    %v665 = vrcp.pop %v660
    %v666 = vmul.f32 1.0, %v665
    %v667 = vrcp.pop %v661
    %v668 = vmul.f32 1.0, %v667
    %v669 = vrcp.pop %v662
    %v670 = vmul.f32 1.0, %v669
    %v671 = vmul.f32 %v664, 1.0614054
    %v672 = vmul.f32 %v666, 1.0614054
    %v673 = vmul.f32 %v668, 1.0614054
    %v674 = vmul.f32 %v670, 1.0614054
    %v675 = vadd.f32 %v671, -1.4531521
    %v676 = vadd.f32 %v672, -1.4531521
    %v677 = vadd.f32 %v673, -1.4531521
    %v678 = vadd.f32 %v674, -1.4531521
    %v679 = vmul.f32 %v675, %v664
    %v680 = vmul.f32 %v676, %v666
    %v681 = vmul.f32 %v677, %v668
    %v682 = vmul.f32 %v678, %v670
    %v683 = vadd.f32 %v679, 1.4214138
    %v684 = vadd.f32 %v680, 1.4214138
    %v685 = vadd.f32 %v681, 1.4214138
    %v686 = vadd.f32 %v682, 1.4214138
    %v687 = vmul.f32 %v683, %v664
    %v688 = vmul.f32 %v684, %v666
    %v689 = vmul.f32 %v685, %v668
    %v690 = vmul.f32 %v686, %v670
    %v691 = vadd.f32 %v687, -0.28449672
    %v692 = vadd.f32 %v688, -0.28449672
    %v693 = vadd.f32 %v689, -0.28449672
    %v694 = vadd.f32 %v690, -0.28449672
    %v695 = vmul.f32 %v691, %v664
    %v696 = vmul.f32 %v692, %v666
    %v697 = vmul.f32 %v693, %v668
    %v698 = vmul.f32 %v694, %v670
    %v699 = vadd.f32 %v695, 0.2548296
    %v700 = vadd.f32 %v696, 0.2548296
    %v701 = vadd.f32 %v697, 0.2548296
    %v702 = vadd.f32 %v698, 0.2548296
    %v703 = vmul.f32 %v699, %v664
    %v704 = vmul.f32 %v700, %v666
    %v705 = vmul.f32 %v701, %v668
    %v706 = vmul.f32 %v702, %v670
    %v707 = vsub.f32 0.0, %v651
    %v708 = vsub.f32 0.0, %v652
    %v709 = vsub.f32 0.0, %v653
    %v710 = vsub.f32 0.0, %v654
    %v711 = vmul.f32 %v707, %v651
    %v712 = vmul.f32 %v708, %v652
    %v713 = vmul.f32 %v709, %v653
    %v714 = vmul.f32 %v710, %v654
    %v715 = vmul.f32 %v711, 1.442695
    %v716 = vpow.pop %v715
    %v717 = vmul.f32 %v712, 1.442695
    %v718 = vpow.pop %v717
    %v719 = vmul.f32 %v713, 1.442695
    %v720 = vpow.pop %v719
    %v721 = vmul.f32 %v714, 1.442695
    %v722 = vpow.pop %v721
    %v723 = vmul.f32 %v703, %v716
    %v724 = vmul.f32 %v704, %v718
    %v725 = vmul.f32 %v705, %v720
    %v726 = vmul.f32 %v706, %v722
    %v727 = vsub.f32 1.0, %v723
    %v728 = vsub.f32 1.0, %v724
    %v729 = vsub.f32 1.0, %v725
    %v730 = vsub.f32 1.0, %v726
    %vm731 = vcmp.lt.f32.partialorder %v647, 0.0
    %vm732 = vcmp.lt.f32.partialorder %v648, 0.0
    %vm733 = vcmp.lt.f32.partialorder %v649, 0.0
    %vm734 = vcmp.lt.f32.partialorder %v650, 0.0
    %v735 = vsub.f32 0.0, %v727
    %v736 = vsub.f32 0.0, %v728
    %v737 = vsub.f32 0.0, %v729
    %v738 = vsub.f32 0.0, %v730
    %v739 = vsel %vm731, %v735, %v727
    %v740 = vsel %vm732, %v736, %v728
    %v741 = vsel %vm733, %v737, %v729
    %v742 = vsel %vm734, %v738, %v730
    %v743 = vadd.f32 %v739, 1.0
    %v744 = vadd.f32 %v740, 1.0
    %v745 = vadd.f32 %v741, 1.0
    %v746 = vadd.f32 %v742, 1.0
    %v747 = vmul.f32 %v643, %v743
    %v748 = vmul.f32 %v644, %v744
    %v749 = vmul.f32 %v645, %v745
    %v750 = vmul.f32 %v646, %v746
    %751 = vst [vmem:[#allocation2 + $0x60] sm:$0xff] %v747
    %752 = vst [vmem:[#allocation2 + $0x68] sm:$0xff] %v748
    %753 = vst [vmem:[#allocation2 + $0x70] sm:$0xff] %v749
    %754 = vst [vmem:[#allocation2 + $0x78] sm:$0xff] %v750
    %v755 = vld [vmem:[%s3] sm:$0xf]
    %v756 = vld [vmem:[#allocation2] sm:$0xff]
    %v757 = vld [vmem:[#allocation2 + $0x8] sm:$0xff]
    %v758 = vld [vmem:[#allocation2 + $0x10] sm:$0xff]
    %v759 = vld [vmem:[#allocation2 + $0x18] sm:$0xff]
    %v760 = vld [vmem:[#allocation2 + $0x20] sm:$0xff]
    %v761 = vld [vmem:[#allocation2 + $0x28] sm:$0xff]
    %v762 = vld [vmem:[#allocation2 + $0x30] sm:$0xff]
    %v763 = vld [vmem:[#allocation2 + $0x38] sm:$0xff]
    %v764 = vld [vmem:[#allocation2 + $0x40] sm:$0xff]
    %v765 = vld [vmem:[#allocation2 + $0x48] sm:$0xff]
    %v766 = vld [vmem:[#allocation2 + $0x50] sm:$0xff]
    %v767 = vld [vmem:[#allocation2 + $0x58] sm:$0xff]
    %v768 = vld [vmem:[#allocation2 + $0x60] sm:$0xff]
    %v769 = vld [vmem:[#allocation2 + $0x68] sm:$0xff]
    %v770 = vld [vmem:[#allocation2 + $0x70] sm:$0xff]
    %v771 = vld [vmem:[#allocation2 + $0x78] sm:$0xff]
    %v772 = vld [vmem:[%s4] sm:$0xf]
    %774 = vset.pattern.permute.xlu0 0
    %775 = vperm.xlu0 %774, %v772
    %v776 = vpop.permute.xlu0 %775
    %vm778 = vcmask 261120
    %v780 = vsel %vm778, %v755, 0
    %782 = vmatprep.subr.mxu0 0.0
    %783 = vmatpush1.msra.mxu0 0.0
    %784 = vmatprep.subr.mxu0 0.0
    %785 = vmatpush1.msra.mxu0 0.0
    %786 = vmatprep.subr.mxu0 0.0
    %787 = vmatpush1.msra.mxu0 0.0
    %788 = vmatprep.subr.mxu0 0.0
    %789 = vmatpush1.msra.mxu0 0.0
    %790 = vmatprep.subr.mxu0 0.0
    %791 = vmatpush1.msra.mxu0 0.0
    %792 = vmatprep.subr.mxu0 0.0
    %793 = vmatpush1.msra.mxu0 0.0
    %794 = vmatprep.subr.mxu0 0.0
    %795 = vmatpush1.msra.mxu0 0.0
    %796 = vmatprep.subr.mxu0 0.0
    %797 = vmatpush1.msra.mxu0 0.0
    %798 = vmatprep.subr.mxu0 0.0
    %799 = vmatpush1.msra.mxu0 0.0
    %800 = vmatprep.subr.mxu0 0.0
    %801 = vmatpush1.msra.mxu0 0.0
    %802 = vmatprep.subr.mxu0 0.0
    %803 = vmatpush1.msra.mxu0 0.0
    %804 = vmatprep.subr.mxu0 0.0
    %805 = vmatpush1.msra.mxu0 0.0
    %806 = vmatprep.subr.mxu0 %v769
    %807 = vmatpush1.msra.mxu0 %v768
    %808 = vmatprep.subr.mxu0 %v765
    %809 = vmatpush1.msra.mxu0 %v764
    %810 = vmatprep.subr.mxu0 %v761
    %811 = vmatpush1.msra.mxu0 %v760
    %812 = vmatprep.subr.mxu0 %v757
    %813 = vmatpush1.msra.mxu0 %v756
    %814 = vmatprep.subr.mxu0 0.0
    %815 = vmatpush2.msra.mxu0 0.0
    %816 = vmatprep.subr.mxu0 0.0
    %817 = vmatpush2.msra.mxu0 0.0
    %818 = vmatprep.subr.mxu0 0.0
    %819 = vmatpush2.msra.mxu0 0.0
    %820 = vmatprep.subr.mxu0 0.0
    %821 = vmatpush2.msra.mxu0 0.0
    %822 = vmatprep.subr.mxu0 0.0
    %823 = vmatpush2.msra.mxu0 0.0
    %824 = vmatprep.subr.mxu0 0.0
    %825 = vmatpush2.msra.mxu0 0.0
    %826 = vmatprep.subr.mxu0 0.0
    %827 = vmatpush2.msra.mxu0 0.0
    %828 = vmatprep.subr.mxu0 0.0
    %829 = vmatpush2.msra.mxu0 0.0
    %830 = vmatprep.subr.mxu0 0.0
    %831 = vmatpush2.msra.mxu0 0.0
    %832 = vmatprep.subr.mxu0 0.0
    %833 = vmatpush2.msra.mxu0 0.0
    %834 = vmatprep.subr.mxu0 0.0
    %835 = vmatpush2.msra.mxu0 0.0
    %836 = vmatprep.subr.mxu0 0.0
    %837 = vmatpush2.msra.mxu0 0.0
    %838 = vmatprep.subr.mxu0 0.0
    %839 = vmatpush2.msra.mxu0 0.0
    %840 = vmatprep.subr.mxu0 0.0
    %841 = vmatpush2.msra.mxu0 0.0
    %842 = vmatprep.subr.mxu0 0.0
    %843 = vmatpush2.msra.mxu0 0.0
    %844 = vmatprep.subr.mxu0 0.0
    %845 = vmatpush2.msra.mxu0 0.0
    %846 = vmatprep.mubr.f32.mxu0 0.0
    %847 = vmatmul.mubr.f32.gmra.mxu0 %v780
    %v848 = vpop.f32.mrf.mxu0
    %v849 = vadd.f32 %v776, %v848
    %v850 = vpop.f32.mrf.mxu0
    %v851 = vadd.f32 %v776, %v850
    %852 = vdwg.mxu0
    %853 = vmatprep.subr.mxu0 0.0
    %854 = vmatpush1.msra.mxu0 0.0
    %855 = vmatprep.subr.mxu0 0.0
    %856 = vmatpush1.msra.mxu0 0.0
    %857 = vmatprep.subr.mxu0 0.0
    %858 = vmatpush1.msra.mxu0 0.0
    %859 = vmatprep.subr.mxu0 0.0
    %860 = vmatpush1.msra.mxu0 0.0
    %861 = vmatprep.subr.mxu0 0.0
    %862 = vmatpush1.msra.mxu0 0.0
    %863 = vmatprep.subr.mxu0 0.0
    %864 = vmatpush1.msra.mxu0 0.0
    %865 = vmatprep.subr.mxu0 0.0
    %866 = vmatpush1.msra.mxu0 0.0
    %867 = vmatprep.subr.mxu0 0.0
    %868 = vmatpush1.msra.mxu0 0.0
    %869 = vmatprep.subr.mxu0 0.0
    %870 = vmatpush1.msra.mxu0 0.0
    %871 = vmatprep.subr.mxu0 0.0
    %872 = vmatpush1.msra.mxu0 0.0
    %873 = vmatprep.subr.mxu0 0.0
    %874 = vmatpush1.msra.mxu0 0.0
    %875 = vmatprep.subr.mxu0 0.0
    %876 = vmatpush1.msra.mxu0 0.0
    %877 = vmatprep.subr.mxu0 %v771
    %878 = vmatpush1.msra.mxu0 %v770
    %879 = vmatprep.subr.mxu0 %v767
    %880 = vmatpush1.msra.mxu0 %v766
    %881 = vmatprep.subr.mxu0 %v763
    %882 = vmatpush1.msra.mxu0 %v762
    %883 = vmatprep.subr.mxu0 %v759
    %884 = vmatpush1.msra.mxu0 %v758
    %885 = vmatprep.subr.mxu0 0.0
    %886 = vmatpush2.msra.mxu0 0.0
    %887 = vmatprep.subr.mxu0 0.0
    %888 = vmatpush2.msra.mxu0 0.0
    %889 = vmatprep.subr.mxu0 0.0
    %890 = vmatpush2.msra.mxu0 0.0
    %891 = vmatprep.subr.mxu0 0.0
    %892 = vmatpush2.msra.mxu0 0.0
    %893 = vmatprep.subr.mxu0 0.0
    %894 = vmatpush2.msra.mxu0 0.0
    %895 = vmatprep.subr.mxu0 0.0
    %896 = vmatpush2.msra.mxu0 0.0
    %897 = vmatprep.subr.mxu0 0.0
    %898 = vmatpush2.msra.mxu0 0.0
    %899 = vmatprep.subr.mxu0 0.0
    %900 = vmatpush2.msra.mxu0 0.0
    %901 = vmatprep.subr.mxu0 0.0
    %902 = vmatpush2.msra.mxu0 0.0
    %903 = vmatprep.subr.mxu0 0.0
    %904 = vmatpush2.msra.mxu0 0.0
    %905 = vmatprep.subr.mxu0 0.0
    %906 = vmatpush2.msra.mxu0 0.0
    %907 = vmatprep.subr.mxu0 0.0
    %908 = vmatpush2.msra.mxu0 0.0
    %909 = vmatprep.subr.mxu0 0.0
    %910 = vmatpush2.msra.mxu0 0.0
    %911 = vmatprep.subr.mxu0 0.0
    %912 = vmatpush2.msra.mxu0 0.0
    %913 = vmatprep.subr.mxu0 0.0
    %914 = vmatpush2.msra.mxu0 0.0
    %915 = vmatprep.subr.mxu0 0.0
    %916 = vmatpush2.msra.mxu0 0.0
    %917 = vmatprep.mubr.f32.mxu0 0.0
    %918 = vmatmul.mubr.f32.gmra.mxu0 %v780
    %v919 = vpop.f32.mrf.mxu0
    %v920 = vadd.f32 %v776, %v919
    %v921 = vpop.f32.mrf.mxu0
    %v922 = vadd.f32 %v776, %v921
    %923 = vdwg.mxu0
    %v926 = vrot.slane %v920, 4
    %v927 = vrot.slane %v922, 4
    %v930 = vsel %vm46, %v849, %v926
    %v931 = vsel %vm46, %v851, %v927
    %932 = vst [vmem:[#allocation3] sm:$0xff] %v930
    %933 = vst [vmem:[#allocation3 + $0x8] sm:$0xff] %v931
    // Predicated region
    $region22: #{tpu_custom_call.1} parent=1 // pred_check
      _
    $region23: #{tpu_custom_call.1} parent=1 // pred_check_branch
      %935 = sbr.rel (0) target = $region25
    $region24: #{tpu_custom_call.1} parent=1 // pred_region
      %s937 = ssub.s32 256, 256
      %938 = vsyncadd [#allocation4], %s937
      %s940 = sshll.u32 [#allocation3], 4
      %s941 = int_to_ptr.vmem [resolvable:$true] %s940
      %943 = dma.vmem_to_hbm [thread:$0]  %s941, 256, %s5, [#allocation4]
    $region25: #{tpu_custom_call.1} parent=1 // pred_fallthru
      _
    // Predicated region
    $region26: #{tpu_custom_call.1} parent=1 // pred_check
      _
    $region27: #{tpu_custom_call.1} parent=1 // pred_check_branch
      %945 = sbr.rel (0) target = $region29
    $region28: #{tpu_custom_call.1} parent=1 // pred_region
      %946 = dma.done [#allocation4], 256
    $region29: #{tpu_custom_call.1} parent=1 // pred_fallthru
      _
    %947 = vsyncpa [#allocation4], 1

</llo_original>
